<compile_context>
chip_gen: v5e
topology: v5e:2x2
jax: 0.10.0
libtpu: 0.0.40
codegen_flags: <defaults>
</compile_context>

<pallas_src>
import functools

import jax
import jax.numpy as jnp
from jax.experimental import pallas as pl
from jax.experimental.pallas import tpu as pltpu


def _cdiv(a: int, b: int) -> int:
    return -(-a // b)


def _round_up(x: int, m: int) -> int:
    return _cdiv(x, m) * m


# ---------------------------------------------------------------------------
# Hardware / feature probes (each evaluated at most once per process).
# ---------------------------------------------------------------------------

@functools.lru_cache(maxsize=None)
def _vmem_capacity_bytes() -> int:
    """Physical per-core VMEM; conservative (v7x) fallback if the query fails."""
    try:
        return int(pltpu.get_tpu_info().vmem_capacity_bytes)
    except Exception:
        return 64 << 20


@functools.lru_cache(maxsize=None)
def _is_v5e() -> bool:
    try:
        kind = jax.devices()[0].device_kind.lower()
    except Exception:
        return False
    return ("v5 lite" in kind) or ("v5e" in kind) or ("v5litepod" in kind)


@functools.lru_cache(maxsize=None)
def _buffered1_supported() -> bool:
    """One-time probe: does this jax build accept pipeline_mode=pl.Buffered(1)?"""
    try:
        def k(x_ref, o_ref):
            o_ref[...] = x_ref[...] + 1.0

        fn = pl.pallas_call(
            k,
            out_shape=jax.ShapeDtypeStruct((8, 128), jnp.float32),
            grid=(2,),
            in_specs=[pl.BlockSpec((8, 128), lambda i: (0, 0),
                                   pipeline_mode=pl.Buffered(1))],
            out_specs=pl.BlockSpec((8, 128), lambda i: (0, 0)),
        )
        jax.jit(fn).lower(jnp.zeros((8, 128), jnp.float32)).compile()
        return True
    except Exception:
        return False


# ---------------------------------------------------------------------------
# Kernels
# ---------------------------------------------------------------------------

def _ffn_kernel_resident(x_ref, w1_ref, b1_ref, w2_ref, b2_ref, o_ref):
    # Weights fully resident in VMEM; grid is (row_tiles,). No scratch needed.
    h = jnp.dot(x_ref[...], w1_ref[...], preferred_element_type=jnp.float32)
    h = jnp.maximum(h + b1_ref[...].astype(jnp.float32), 0.0)
    y = jnp.dot(h.astype(w2_ref.dtype), w2_ref[...],
                preferred_element_type=jnp.float32)
    o_ref[...] = (y + b2_ref[...].astype(jnp.float32)).astype(o_ref.dtype)


def _ffn_kernel_tiled(x_ref, w1_ref, b1_ref, w2_ref, b2_ref, o_ref, acc_ref):
    # Hidden axis tiled as the last (arbitrary) grid axis; f32 accumulator.
    hk = pl.program_id(1)

    @pl.when(hk == 0)
    def _init():
        acc_ref[...] = jnp.zeros_like(acc_ref)

    h = jnp.dot(x_ref[...], w1_ref[...], preferred_element_type=jnp.float32)
    h = jnp.maximum(h + b1_ref[...].astype(jnp.float32), 0.0)
    acc_ref[...] += jnp.dot(h.astype(w2_ref.dtype), w2_ref[...],
                            preferred_element_type=jnp.float32)

    @pl.when(hk == pl.num_programs(1) - 1)
    def _finalize():
        o_ref[...] = (acc_ref[...]
                      + b2_ref[...].astype(jnp.float32)).astype(o_ref.dtype)


# ---------------------------------------------------------------------------
# pallas_call builders
# ---------------------------------------------------------------------------

def _const_spec(shape, index_map, single_buffer):
    # Grid-constant block: a single VMEM copy suffices when Buffered(1) works.
    if single_buffer:
        return pl.BlockSpec(shape, index_map, pipeline_mode=pl.Buffered(1))
    return pl.BlockSpec(shape, index_map)


@functools.lru_cache(maxsize=None)
def _build_ffn_fn(rows_pad, M_pad, H_pad, tm, tH, dtype_name,
                  single_buffer, vmem_limit, flops, bytes_accessed):
    """Jitted callable (x2d, w1, b1, w2, b2) -> (rows_pad, M_pad).
    tH is None -> weight-resident path; tH int -> hidden-axis-tiled path."""
    dtype = jnp.dtype(dtype_name)
    cost = pl.CostEstimate(flops=flops, transcendentals=0,
                           bytes_accessed=bytes_accessed)

    if tH is None:
        in_specs = [
            pl.BlockSpec((tm, M_pad), lambda i: (i, 0)),                      # x
            _const_spec((M_pad, H_pad), lambda i: (0, 0), single_buffer),     # W1
            _const_spec((1, H_pad),     lambda i: (0, 0), single_buffer),     # b1
            _const_spec((H_pad, M_pad), lambda i: (0, 0), single_buffer),     # W2
            _const_spec((1, M_pad),     lambda i: (0, 0), single_buffer),     # b2
        ]
        call = pl.pallas_call(
            _ffn_kernel_resident,
            out_shape=jax.ShapeDtypeStruct((rows_pad, M_pad), dtype),
            grid_spec=pltpu.PrefetchScalarGridSpec(
                num_scalar_prefetch=0,
                grid=(rows_pad // tm,),
                in_specs=in_specs,
                out_specs=pl.BlockSpec((tm, M_pad), lambda i: (i, 0)),
            ),
            compiler_params=pltpu.CompilerParams(
                dimension_semantics=("parallel",),
                vmem_limit_bytes=vmem_limit),
            cost_estimate=cost,
        )
    else:
        n_h = H_pad // tH
        const_w = single_buffer and (n_h == 1)
        in_specs = [
            pl.BlockSpec((tm, M_pad), lambda i, h: (i, 0)),                   # x
            _const_spec((M_pad, tH), lambda i, h: (0, h), const_w),           # W1
            _const_spec((1, tH),     lambda i, h: (0, h), const_w),           # b1
            _const_spec((tH, M_pad), lambda i, h: (h, 0), const_w),           # W2
            _const_spec((1, M_pad),  lambda i, h: (0, 0), single_buffer),     # b2
        ]
        call = pl.pallas_call(
            _ffn_kernel_tiled,
            out_shape=jax.ShapeDtypeStruct((rows_pad, M_pad), dtype),
            grid_spec=pltpu.PrefetchScalarGridSpec(
                num_scalar_prefetch=0,
                grid=(rows_pad // tm, n_h),
                in_specs=in_specs,
                out_specs=pl.BlockSpec((tm, M_pad), lambda i, h: (i, 0)),
                scratch_shapes=[pltpu.VMEM((tm, M_pad), jnp.float32)],
            ),
            compiler_params=pltpu.CompilerParams(
                dimension_semantics=("parallel", "arbitrary"),
                vmem_limit_bytes=vmem_limit),
            cost_estimate=cost,
        )
    return jax.jit(call)


# ---------------------------------------------------------------------------
# Tile / path selection
# ---------------------------------------------------------------------------

def _sublane_pack(itemsize: int) -> int:
    return {4: 8, 2: 16, 1: 32}.get(itemsize, 8)


def _balanced_row_tile(rows: int, target: int, pack: int) -> int:
    """Near-equal row tiles (waste < one sublane group), rounded to the pack."""
    n_tiles = max(1, _cdiv(rows, max(target, pack)))
    return max(pack, _round_up(_cdiv(rows, n_tiles), pack))


def _resident_ws_bytes(tm, M_pad, H_pad, e, wbuf):
    return (4 * tm * M_pad * e                                # x + out (2-buffered)
            + wbuf * (2 * M_pad * H_pad + H_pad + M_pad) * e  # W1, W2, b1, b2
            + tm * H_pad * (4 + e)                            # f32 h + narrow copy
            + tm * M_pad * 4)                                 # f32 matmul-2 result


def _tiled_ws_bytes(tm, tH, M_pad, e):
    return (4 * tm * M_pad * e
            + 2 * (2 * M_pad * tH + tH) * e + 2 * M_pad * e   # streamed weight tiles
            + tm * M_pad * 4                                  # acc scratch
            + tm * tH * (4 + e)
            + tm * M_pad * 4)


def _select_config(rows, M, H, dtype, row_tile, force_hidden_tile):
    e = jnp.dtype(dtype).itemsize
    pack = _sublane_pack(e)
    M_pad = _round_up(M, 128)
    # TODO(synk): on v6e/v7x a 256-aligned M_pad/tH can fill MXU tiles better
    # when M % 256 != 0; kept at 128 to avoid extra weight-stream bytes.

    cap = _vmem_capacity_bytes()
    fit_budget = int(cap * 0.70)             # leave headroom for compiler scratch
    single_buffer = _buffered1_supported()
    wbuf = 1 if single_buffer else 2

    # -- Preferred: keep the whole (padded) weight set resident in VMEM. ------
    if force_hidden_tile is None:
        H_pad = _round_up(H, 128)
        target = row_tile if row_tile is not None else 512
        tm = _balanced_row_tile(rows, target, pack)
        # Auto-shrink tm as M/H grow so the working set fits (cheap stand-in
        # for a full M tiling of the x / out tiles).
        while tm > pack and _resident_ws_bytes(tm, M_pad, H_pad, e, wbuf) > fit_budget:
            tm = max(pack, _round_up(tm // 2, pack))
        ws = _resident_ws_bytes(tm, M_pad, H_pad, e, wbuf)
        if ws <= fit_budget:
            return dict(kind="resident", tm=tm, tH=None, M_pad=M_pad,
                        H_pad=H_pad, ws=ws, single_buffer=single_buffer, e=e)

    # -- Fallback: stream weight tiles over a tiled hidden axis. --------------
    # Intensity vs streamed weights ~ 2*tm/e flop/byte: push tm toward 1024
    # for bf16 on v6e/v7x; v5e is already compute-bound at 512.
    if row_tile is not None:
        target = row_tile
    elif e <= 2 and not _is_v5e():
        target = 1024
    else:
        target = 512

    max_tH = _round_up(H, 128)
    if force_hidden_tile is not None:
        cands = [min(_round_up(force_hidden_tile, 128), max_tH)]
    else:
        cands = [t for t in (1024, 768, 512, 384, 256, 128) if t <= max_tH] or [max_tH]

    tm = _balanced_row_tile(rows, target, pack)
    while True:
        chosen = None
        for tH in cands:                      # descending: largest fitting tile
            if _tiled_ws_bytes(tm, tH, M_pad, e) <= fit_budget:
                chosen = tH
                break
        if chosen is not None or tm <= pack:
            tH = chosen if chosen is not None else cands[-1]
            H_pad = _round_up(H, tH)
            return dict(kind="tiled", tm=tm, tH=tH, M_pad=M_pad, H_pad=H_pad,
                        ws=_tiled_ws_bytes(tm, tH, M_pad, e),
                        single_buffer=single_buffer, e=e)
        tm = max(pack, _round_up(tm // 2, pack))


# ---------------------------------------------------------------------------
# Public API
# ---------------------------------------------------------------------------

def make_feedforward(w1, b1, w2, b2, *, row_tile=None, force_hidden_tile=None):
    """Returns fn(x: (N,K,M)) -> (N,K,M). Weights/biases are padded once here
    (hoisted out of the per-step path); per call we only pad x if needed."""
    M, H = w1.shape
    assert w2.shape == (H, M) and b1.shape == (H,) and b2.shape == (M,)
    dtype = w1.dtype

    padded_cache = {}   # (M_pad, H_pad) -> padded weight tuple
    cfg_cache = {}      # rows -> (cfg, jitted fn, rows_pad)

    def _padded_weights(M_pad, H_pad):
        key = (M_pad, H_pad)
        if key not in padded_cache:
            w1p = w1 if (M_pad == M and H_pad == H) else jnp.pad(
                w1, ((0, M_pad - M), (0, H_pad - H)))
            b1p = (b1 if H_pad == H else jnp.pad(b1, (0, H_pad - H))).reshape(1, H_pad)
            w2p = w2 if (M_pad == M and H_pad == H) else jnp.pad(
                w2, ((0, H_pad - H), (0, M_pad - M)))
            b2p = (b2 if M_pad == M else jnp.pad(b2, (0, M_pad - M))).reshape(1, M_pad)
            padded_cache[key] = (w1p, b1p, w2p, b2p)
        return padded_cache[key]

    def apply(x):
        N, K, Mx = x.shape
        assert Mx == M, "embedding dim of x must match the weights"
        rows = N * K

        if rows not in cfg_cache:
            cfg = _select_config(rows, M, H, dtype, row_tile, force_hidden_tile)
            tm, tH = cfg["tm"], cfg["tH"]
            M_pad, H_pad, e = cfg["M_pad"], cfg["H_pad"], cfg["e"]
            rows_pad = _round_up(rows, tm)
            cap = _vmem_capacity_bytes()
            vmem_limit = int(min(max(1.25 * cfg["ws"] + (2 << 20), 32 << 20),
                                 cap * 0.85))
            flops = 4 * rows_pad * M_pad * H_pad
            n_h = 1 if tH is None else H_pad // tH
            if n_h == 1:
                w_bytes = (2 * M_pad * H_pad + H_pad + M_pad) * e
            else:  # weights re-streamed once per row tile
                w_bytes = ((rows_pad // tm) * (2 * M_pad * H_pad + H_pad) + M_pad) * e
            bytes_accessed = 2 * rows_pad * M_pad * e + w_bytes
            fn = _build_ffn_fn(rows_pad, M_pad, H_pad, tm, tH,
                               jnp.dtype(dtype).name, cfg["single_buffer"],
                               int(vmem_limit), int(flops), int(bytes_accessed))
            cfg_cache[rows] = (cfg, fn, rows_pad)

        cfg, fn, rows_pad = cfg_cache[rows]
        M_pad, H_pad = cfg["M_pad"], cfg["H_pad"]

        x2d = x.reshape(rows, M)
        if x2d.dtype != dtype:
            x2d = x2d.astype(dtype)
        if rows_pad != rows or M_pad != M:       # skip zero-width pads entirely
            x2d = jnp.pad(x2d, ((0, rows_pad - rows), (0, M_pad - M)))

        w1p, b1p, w2p, b2p = _padded_weights(M_pad, H_pad)
        out2d = fn(x2d, w1p, b1p, w2p, b2p)
        if rows_pad != rows or M_pad != M:
            out2d = out2d[:rows, :M]
        return out2d.reshape(N, K, M)

    return apply


def feedforward_block(x, w1, b1, w2, b2, *, row_tile=None, force_hidden_tile=None):
    """One-shot functional entry. For repeated use prefer make_feedforward
    (weight padding hoisted out of the per-call path)."""
    return make_feedforward(w1, b1, w2, b2, row_tile=row_tile,
                            force_hidden_tile=force_hidden_tile)(x)


def init_params(key, inp_dim, hidden_dim):
    """Mirror the module's init: weights ~ U(-c, c), c = sqrt(6/(in+hid)).
    Weights stored pre-transposed for the kernel (y = x @ W + b)."""
    c = jnp.sqrt(6.0 / (inp_dim + hidden_dim))
    k1, k2, k3, k4 = jax.random.split(key, 4)
    w1 = jax.random.uniform(k1, (inp_dim, hidden_dim), jnp.float32, -c, c)
    w2 = jax.random.uniform(k2, (hidden_dim, inp_dim), jnp.float32, -c, c)
    b1 = jax.random.uniform(k3, (hidden_dim,), jnp.float32,
                            -1.0 / jnp.sqrt(inp_dim), 1.0 / jnp.sqrt(inp_dim))
    b2 = jax.random.uniform(k4, (inp_dim,), jnp.float32,
                            -1.0 / jnp.sqrt(hidden_dim), 1.0 / jnp.sqrt(hidden_dim))
    return w1, b1, w2, b2


if __name__ == "__main__":
    key = jax.random.PRNGKey(0)
    kx, kp, kx2, kp2, kx3, kp3 = jax.random.split(key, 6)

    # --- 1. fp32, module-scale shapes (N, K, M) = (2, 8, 32), H = 64 ---------
    N, K, M, H = 2, 8, 32, 64
    x = jax.random.normal(kx, (N, K, M), jnp.float32)
    w1, b1, w2, b2 = init_params(kp, M, H)
    y = jax.block_until_ready(feedforward_block(x, w1, b1, w2, b2))
    ref = (jnp.maximum(x.reshape(-1, M) @ w1 + b1, 0.0) @ w2 + b2).reshape(N, K, M)
    assert y.shape == (N, K, M)
    assert jnp.allclose(y, ref, atol=1e-4, rtol=1e-4), float(jnp.max(jnp.abs(y - ref)))

    # --- 2. bf16, lane-aligned shapes through the weight-resident path -------
    N2, K2, M2, H2 = 2, 128, 256, 512
    xb = jax.random.normal(kx2, (N2, K2, M2), jnp.float32).astype(jnp.bfloat16)
    w1b, b1b, w2b, b2b = (t.astype(jnp.bfloat16) for t in init_params(kp2, M2, H2))
    ffn_b = make_feedforward(w1b, b1b, w2b, b2b)   # weights padded once here
    yb = jax.block_until_ready(ffn_b(xb))
    xf = xb.astype(jnp.float32).reshape(-1, M2)
    refb = (jnp.maximum(xf @ w1b.astype(jnp.float32) + b1b.astype(jnp.float32), 0.0)
            @ w2b.astype(jnp.float32) + b2b.astype(jnp.float32)).reshape(N2, K2, M2)
    # bf16 weights + bf16 intermediate (f32 accumulation): loose tolerance.
    assert float(jnp.max(jnp.abs(yb.astype(jnp.float32) - refb))) < 5e-2

    # --- 3. fp32, forced hidden-axis tiling (exercise the streamed path) -----
    N3, K3, M3, H3 = 1, 70, 96, 384
    x3 = jax.random.normal(kx3, (N3, K3, M3), jnp.float32)
    w13, b13, w23, b23 = init_params(kp3, M3, H3)
    y3 = jax.block_until_ready(
        feedforward_block(x3, w13, b13, w23, b23, force_hidden_tile=128))
    ref3 = (jnp.maximum(x3.reshape(-1, M3) @ w13 + b13, 0.0) @ w23 + b23
            ).reshape(N3, K3, M3)
    assert jnp.allclose(y3, ref3, atol=1e-4, rtol=1e-4), float(jnp.max(jnp.abs(y3 - ref3)))

    print("KERNEL_OK")
</pallas_src>

<mosaic_0001>
module attributes {stable_mosaic.version = 11 : i64} {
  func.func @_ffn_kernel_resident(%arg0: i32, %arg1: memref<16x128xf32, #tpu.memory_space<vmem>>, %arg2: memref<128x128xf32, #tpu.memory_space<vmem>>, %arg3: memref<1x128xf32, #tpu.memory_space<vmem>>, %arg4: memref<128x128xf32, #tpu.memory_space<vmem>>, %arg5: memref<1x128xf32, #tpu.memory_space<vmem>>, %arg6: memref<16x128xf32, #tpu.memory_space<vmem>>) attributes {dimension_semantics = [#tpu.dimension_semantics<parallel>], iteration_bounds = array<i64: 1>, scalar_prefetch = 0 : i64, scratch_operands = 0 : i64, tpu.core_type = #tpu.core_type<tc>, window_params = [{transform_indices = @transform_0, window_bounds = array<i64: 16, 128>}, {pipeline_mode = #tpu.pipeline_mode<synchronous>, transform_indices = @transform_1, window_bounds = array<i64: 128, 128>}, {pipeline_mode = #tpu.pipeline_mode<synchronous>, transform_indices = @transform_2, window_bounds = array<i64: 1, 128>}, {pipeline_mode = #tpu.pipeline_mode<synchronous>, transform_indices = @transform_3, window_bounds = array<i64: 128, 128>}, {pipeline_mode = #tpu.pipeline_mode<synchronous>, transform_indices = @transform_4, window_bounds = array<i64: 1, 128>}, {transform_indices = @transform_5, window_bounds = array<i64: 16, 128>}]} {
    %c0 = arith.constant 0 : index
    %c0_0 = arith.constant 0 : index
    %0 = vector.load %arg1[%c0, %c0_0] : memref<16x128xf32, #tpu.memory_space<vmem>>, vector<16x128xf32>
    %c0_1 = arith.constant 0 : index
    %c0_2 = arith.constant 0 : index
    %1 = vector.load %arg2[%c0_1, %c0_2] : memref<128x128xf32, #tpu.memory_space<vmem>>, vector<128x128xf32>
    %cst = arith.constant dense<0.000000e+00> : vector<16x128xf32>
    %2 = tpu.matmul %0, %1, %cst {dimension_numbers = #tpu.dot_dimension_numbers<[1], [0], [0], [1], [0, 0, 1, 1], [], []>} : vector<16x128xf32>, vector<128x128xf32>, vector<16x128xf32> -> vector<16x128xf32>
    %c0_3 = arith.constant 0 : index
    %c0_4 = arith.constant 0 : index
    %3 = vector.load %arg3[%c0_3, %c0_4] : memref<1x128xf32, #tpu.memory_space<vmem>>, vector<1x128xf32>
    %4 = vector.broadcast %3 : vector<1x128xf32> to vector<16x128xf32>
    %5 = arith.addf %2, %4 : vector<16x128xf32>
    %cst_5 = arith.constant 0.000000e+00 : f32
    %6 = vector.broadcast %cst_5 : f32 to vector<16x128xf32>
    %7 = arith.maximumf %5, %6 : vector<16x128xf32>
    %c0_6 = arith.constant 0 : index
    %c0_7 = arith.constant 0 : index
    %8 = vector.load %arg4[%c0_6, %c0_7] : memref<128x128xf32, #tpu.memory_space<vmem>>, vector<128x128xf32>
    %cst_8 = arith.constant dense<0.000000e+00> : vector<16x128xf32>
    %9 = tpu.matmul %7, %8, %cst_8 {dimension_numbers = #tpu.dot_dimension_numbers<[1], [0], [0], [1], [0, 0, 1, 1], [], []>} : vector<16x128xf32>, vector<128x128xf32>, vector<16x128xf32> -> vector<16x128xf32>
    %c0_9 = arith.constant 0 : index
    %c0_10 = arith.constant 0 : index
    %10 = vector.load %arg5[%c0_9, %c0_10] : memref<1x128xf32, #tpu.memory_space<vmem>>, vector<1x128xf32>
    %11 = vector.broadcast %10 : vector<1x128xf32> to vector<16x128xf32>
    %12 = arith.addf %9, %11 : vector<16x128xf32>
    %c0_11 = arith.constant 0 : index
    %c0_12 = arith.constant 0 : index
    %13 = vector.load %arg6[%c0_11, %c0_12] : memref<16x128xf32, #tpu.memory_space<vmem>>, vector<16x128xf32>
    tpu.vector_store %arg6[%c0_11, %c0_12], %12 {strides = array<i32>} : memref<16x128xf32, #tpu.memory_space<vmem>>, vector<16x128xf32>,
    return
  }
  func.func @transform_0(%arg0: i32) -> (i32, i32) {
    %c0_i32 = arith.constant 0 : i32
    %c0_i32_0 = arith.constant 0 : i32
    return %arg0, %c0_i32 : i32, i32
  }
  func.func @transform_1(%arg0: i32) -> (i32, i32) {
    %c0_i32 = arith.constant 0 : i32
    %c0_i32_0 = arith.constant 0 : i32
    %c0_i32_1 = arith.constant 0 : i32
    return %c0_i32, %c0_i32_0 : i32, i32
  }
  func.func @transform_2(%arg0: i32) -> (i32, i32) {
    %c0_i32 = arith.constant 0 : i32
    %c0_i32_0 = arith.constant 0 : i32
    %c0_i32_1 = arith.constant 0 : i32
    return %c0_i32, %c0_i32_0 : i32, i32
  }
  func.func @transform_3(%arg0: i32) -> (i32, i32) {
    %c0_i32 = arith.constant 0 : i32
    %c0_i32_0 = arith.constant 0 : i32
    %c0_i32_1 = arith.constant 0 : i32
    return %c0_i32, %c0_i32_0 : i32, i32
  }
  func.func @transform_4(%arg0: i32) -> (i32, i32) {
    %c0_i32 = arith.constant 0 : i32
    %c0_i32_0 = arith.constant 0 : i32
    %c0_i32_1 = arith.constant 0 : i32
    return %c0_i32, %c0_i32_0 : i32, i32
  }
  func.func @transform_5(%arg0: i32) -> (i32, i32) {
    %c0_i32 = arith.constant 0 : i32
    %c0_i32_0 = arith.constant 0 : i32
    return %arg0, %c0_i32 : i32, i32
  }
}

</mosaic_0001>

<llo_original>
// kernel: tpu_custom_call.1
$region0: #{tpu_custom_call.1}
  #allocation0 [shape = 'u32[]', space=smem, size = 0x4, offset = 0x4, fixed_abs, tag = 'smem constant byte address 0x4 - core index']
  #allocation1 [shape = 'u32[72,128]{1,0:T(1,128)}', space=vmem, size = 0x9000, scoped, tag = 'internal scratch']
  %s0 = inlined_call_operand.hbm [shape: f32[16,128], index: 0, kind: input, shape index: {}]
  %s1 = inlined_call_operand.hbm [shape: f32[128,128], index: 1, kind: input, shape index: {}]
  %s2 = inlined_call_operand.vmem [shape: f32[1,128], index: 2, kind: input, shape index: {}]
  %s3 = inlined_call_operand.hbm [shape: f32[128,128], index: 3, kind: input, shape index: {}]
  %s4 = inlined_call_operand.vmem [shape: f32[1,128], index: 4, kind: input, shape index: {}]
  %s5 = inlined_call_operand.hbm [shape: f32[16,128], index: 5, kind: output, shape index: {}]
  %s6 = sld [smem:[#allocation0]]
  $region42: #{tpu_custom_call.1} parent=0
    _
  %s8 = ssub.s32 1, %s6
  %s9 = scalar_select 0, %s8, %s6
  $region1: #{tpu_custom_call.1} parent=0
    #allocation2 [shape = 'u8[8192]{0}', space=vmem, size = 0x2000, scoped, tag = 'input window, operand 0, single buffered']
    #allocation3 [shape = 's32[1]{0}', space=sflag, size = 0x4, scoped, tag = 'scoped memory for tpu_custom_call.1']
    #allocation4 [shape = 's32[1]{0}', space=sflag, size = 0x4, scoped, tag = 'scoped memory for tpu_custom_call.1']
    #allocation5 [shape = 'u8[65536]{0}', space=vmem, size = 0x10000, scoped, tag = 'input window, operand 1, single buffered']
    #allocation6 [shape = 's32[1]{0}', space=sflag, size = 0x4, scoped, tag = 'scoped memory for tpu_custom_call.1']
    #allocation7 [shape = 'u8[65536]{0}', space=vmem, size = 0x10000, scoped, tag = 'input window, operand 3, single buffered']
    #allocation8 [shape = 'u8[8192]{0}', space=vmem, size = 0x2000, scoped, tag = 'output window, operand 0, single buffered']
    %10 = vsyncpa [#allocation3], 0
    %11 = vsyncpa [#allocation6], 0
    %12 = vsyncpa [#allocation4], 0
    // Predicated region
    $region2: #{tpu_custom_call.1} parent=1 // pred_check
      _
    $region3: #{tpu_custom_call.1} parent=1 // pred_check_branch
      %14 = sbr.rel (0) target = $region5
    $region4: #{tpu_custom_call.1} parent=1 // pred_region
      %16 = vsyncadd [#allocation3], 0
      %s17 = sshll.u32 %s0, 4
      %s18 = int_to_ptr.hbm [resolvable:$true] %s17
      %s19 = sshll.u32 [#allocation2], 4
      %s20 = int_to_ptr.vmem [resolvable:$true] %s19
      %25 = dma.hbm_to_vmem [thread:$0]  %s18, 256, %s20, [#allocation3], 128, 128, 8
    $region5: #{tpu_custom_call.1} parent=1 // pred_fallthru
      _
    // Predicated region
    $region6: #{tpu_custom_call.1} parent=1 // pred_check
      _
    $region7: #{tpu_custom_call.1} parent=1 // pred_check_branch
      %27 = sbr.rel (0) target = $region9
    $region8: #{tpu_custom_call.1} parent=1 // pred_region
      %29 = vsyncadd [#allocation6], 0
      %s30 = sshll.u32 %s1, 4
      %s31 = int_to_ptr.hbm [resolvable:$true] %s30
      %s32 = sshll.u32 [#allocation5], 4
      %s33 = int_to_ptr.vmem [resolvable:$true] %s32
      %38 = dma.hbm_to_vmem [thread:$0]  %s31, 2048, %s33, [#allocation6], 128, 128, 8
    $region9: #{tpu_custom_call.1} parent=1 // pred_fallthru
      _
    // Predicated region
    $region10: #{tpu_custom_call.1} parent=1 // pred_check
      _
    $region11: #{tpu_custom_call.1} parent=1 // pred_check_branch
      %40 = sbr.rel (0) target = $region13
    $region12: #{tpu_custom_call.1} parent=1 // pred_region
      _
    $region13: #{tpu_custom_call.1} parent=1 // pred_fallthru
      _
    // Predicated region
    $region14: #{tpu_custom_call.1} parent=1 // pred_check
      _
    $region15: #{tpu_custom_call.1} parent=1 // pred_check_branch
      %42 = sbr.rel (0) target = $region17
    $region16: #{tpu_custom_call.1} parent=1 // pred_region
      %44 = vsyncadd [#allocation6], 0
      %s45 = sshll.u32 %s3, 4
      %s46 = int_to_ptr.hbm [resolvable:$true] %s45
      %s47 = sshll.u32 [#allocation7], 4
      %s48 = int_to_ptr.vmem [resolvable:$true] %s47
      %53 = dma.hbm_to_vmem [thread:$0]  %s46, 2048, %s48, [#allocation6], 128, 128, 8
    $region17: #{tpu_custom_call.1} parent=1 // pred_fallthru
      _
    // Predicated region
    $region18: #{tpu_custom_call.1} parent=1 // pred_check
      _
    $region19: #{tpu_custom_call.1} parent=1 // pred_check_branch
      %55 = sbr.rel (0) target = $region21
    $region20: #{tpu_custom_call.1} parent=1 // pred_region
      _
    $region21: #{tpu_custom_call.1} parent=1 // pred_fallthru
      _
    // Predicated region
    $region22: #{tpu_custom_call.1} parent=1 // pred_check
      _
    $region23: #{tpu_custom_call.1} parent=1 // pred_check_branch
      %57 = sbr.rel (0) target = $region25
    $region24: #{tpu_custom_call.1} parent=1 // pred_region
      %59 = dma.done [#allocation3], 256
    $region25: #{tpu_custom_call.1} parent=1 // pred_fallthru
      _
    // Predicated region
    $region26: #{tpu_custom_call.1} parent=1 // pred_check
      _
    $region27: #{tpu_custom_call.1} parent=1 // pred_check_branch
      %61 = sbr.rel (0) target = $region29
    $region28: #{tpu_custom_call.1} parent=1 // pred_region
      %63 = dma.done [#allocation6], 2048
    $region29: #{tpu_custom_call.1} parent=1 // pred_fallthru
      _
    // Predicated region
    $region30: #{tpu_custom_call.1} parent=1 // pred_check
      _
    $region31: #{tpu_custom_call.1} parent=1 // pred_check_branch
      %65 = sbr.rel (0) target = $region33
    $region32: #{tpu_custom_call.1} parent=1 // pred_region
      %67 = dma.done [#allocation6], 2048
    $region33: #{tpu_custom_call.1} parent=1 // pred_fallthru
      _
    %v68 = vld [vmem:[#allocation2] sm:$0xff]
    %v69 = vld [vmem:[#allocation2 + $0x8] sm:$0xff]
    %v70 = vld [vmem:[#allocation5] sm:$0xff]
    %v71 = vld [vmem:[#allocation5 + $0x8] sm:$0xff]
    %v72 = vld [vmem:[#allocation5 + $0x10] sm:$0xff]
    %v73 = vld [vmem:[#allocation5 + $0x18] sm:$0xff]
    %v74 = vld [vmem:[#allocation5 + $0x20] sm:$0xff]
    %v75 = vld [vmem:[#allocation5 + $0x28] sm:$0xff]
    %v76 = vld [vmem:[#allocation5 + $0x30] sm:$0xff]
    %v77 = vld [vmem:[#allocation5 + $0x38] sm:$0xff]
    %v78 = vld [vmem:[#allocation5 + $0x40] sm:$0xff]
    %v79 = vld [vmem:[#allocation5 + $0x48] sm:$0xff]
    %v80 = vld [vmem:[#allocation5 + $0x50] sm:$0xff]
    %v81 = vld [vmem:[#allocation5 + $0x58] sm:$0xff]
    %v82 = vld [vmem:[#allocation5 + $0x60] sm:$0xff]
    %v83 = vld [vmem:[#allocation5 + $0x68] sm:$0xff]
    %v84 = vld [vmem:[#allocation5 + $0x70] sm:$0xff]
    %v85 = vld [vmem:[#allocation5 + $0x78] sm:$0xff]
    %v86 = vld [vmem:[%s2] sm:$0x1]
    %v88 = vperm.slane %v86, 0
    %90 = vmatpush.msra.mxu0 %v85
    %91 = vmatpush.msra.mxu0 %v84
    %92 = vmatpush.msra.mxu0 %v83
    %93 = vmatpush.msra.mxu0 %v82
    %94 = vmatpush.msra.mxu0 %v81
    %95 = vmatpush.msra.mxu0 %v80
    %96 = vmatpush.msra.mxu0 %v79
    %97 = vmatpush.msra.mxu0 %v78
    %98 = vmatpush.msra.mxu0 %v77
    %99 = vmatpush.msra.mxu0 %v76
    %100 = vmatpush.msra.mxu0 %v75
    %101 = vmatpush.msra.mxu0 %v74
    %102 = vmatpush.msra.mxu0 %v73
    %103 = vmatpush.msra.mxu0 %v72
    %104 = vmatpush.msra.mxu0 %v71
    %105 = vmatpush.msra.mxu0 %v70
    %106 = vmatmul.f32.gmra.mxu0 %v68
    %v107 = vpop.f32.mrf.mxu0
    %v108 = vadd.f32 %v88, %v107
    %109 = vmatmul.f32.gmra.mxu0 %v69
    %v110 = vpop.f32.mrf.mxu0
    %v111 = vadd.f32 %v88, %v110
    %112 = vdwg.mxu0
    %v113 = vmax.f32 %v108, 0.0
    %v114 = vmax.f32 %v111, 0.0
    %v115 = vld [vmem:[#allocation7] sm:$0xff]
    %v116 = vld [vmem:[#allocation7 + $0x8] sm:$0xff]
    %v117 = vld [vmem:[#allocation7 + $0x10] sm:$0xff]
    %v118 = vld [vmem:[#allocation7 + $0x18] sm:$0xff]
    %v119 = vld [vmem:[#allocation7 + $0x20] sm:$0xff]
    %v120 = vld [vmem:[#allocation7 + $0x28] sm:$0xff]
    %v121 = vld [vmem:[#allocation7 + $0x30] sm:$0xff]
    %v122 = vld [vmem:[#allocation7 + $0x38] sm:$0xff]
    %v123 = vld [vmem:[#allocation7 + $0x40] sm:$0xff]
    %v124 = vld [vmem:[#allocation7 + $0x48] sm:$0xff]
    %v125 = vld [vmem:[#allocation7 + $0x50] sm:$0xff]
    %v126 = vld [vmem:[#allocation7 + $0x58] sm:$0xff]
    %v127 = vld [vmem:[#allocation7 + $0x60] sm:$0xff]
    %v128 = vld [vmem:[#allocation7 + $0x68] sm:$0xff]
    %v129 = vld [vmem:[#allocation7 + $0x70] sm:$0xff]
    %v130 = vld [vmem:[#allocation7 + $0x78] sm:$0xff]
    %v131 = vld [vmem:[%s4] sm:$0x1]
    %v133 = vperm.slane %v131, 0
    %135 = vmatpush.msra.mxu0 %v130
    %136 = vmatpush.msra.mxu0 %v129
    %137 = vmatpush.msra.mxu0 %v128
    %138 = vmatpush.msra.mxu0 %v127
    %139 = vmatpush.msra.mxu0 %v126
    %140 = vmatpush.msra.mxu0 %v125
    %141 = vmatpush.msra.mxu0 %v124
    %142 = vmatpush.msra.mxu0 %v123
    %143 = vmatpush.msra.mxu0 %v122
    %144 = vmatpush.msra.mxu0 %v121
    %145 = vmatpush.msra.mxu0 %v120
    %146 = vmatpush.msra.mxu0 %v119
    %147 = vmatpush.msra.mxu0 %v118
    %148 = vmatpush.msra.mxu0 %v117
    %149 = vmatpush.msra.mxu0 %v116
    %150 = vmatpush.msra.mxu0 %v115
    %151 = vmatmul.f32.gmra.mxu0 %v113
    %v152 = vpop.f32.mrf.mxu0
    %v153 = vadd.f32 %v133, %v152
    %154 = vmatmul.f32.gmra.mxu0 %v114
    %v155 = vpop.f32.mrf.mxu0
    %v156 = vadd.f32 %v133, %v155
    %157 = vdwg.mxu0
    %158 = vst [vmem:[#allocation8] sm:$0xff] %v153
    %159 = vst [vmem:[#allocation8 + $0x8] sm:$0xff] %v156
    // Predicated region
    $region34: #{tpu_custom_call.1} parent=1 // pred_check
      _
    $region35: #{tpu_custom_call.1} parent=1 // pred_check_branch
      %161 = sbr.rel (0) target = $region37
    $region36: #{tpu_custom_call.1} parent=1 // pred_region
      %163 = vsyncadd [#allocation4], 0
      %s164 = sshll.u32 [#allocation8], 4
      %s165 = int_to_ptr.vmem [resolvable:$true] %s164
      %s166 = sshll.u32 %s5, 4
      %s167 = int_to_ptr.hbm [resolvable:$true] %s166
      %172 = dma.vmem_to_hbm [thread:$0]  %s165, 256, %s167, [#allocation4], 128, 128, 8
    $region37: #{tpu_custom_call.1} parent=1 // pred_fallthru
      _
    // Predicated region
    $region38: #{tpu_custom_call.1} parent=1 // pred_check
      _
    $region39: #{tpu_custom_call.1} parent=1 // pred_check_branch
      %174 = sbr.rel (0) target = $region41
    $region40: #{tpu_custom_call.1} parent=1 // pred_region
      %176 = dma.done [#allocation4], 256
    $region41: #{tpu_custom_call.1} parent=1 // pred_fallthru
      _
    %177 = vsyncpa [#allocation3], 1
    %178 = vsyncpa [#allocation6], 1
    %179 = vsyncpa [#allocation4], 1

</llo_original>
